<compile_context>
chip_gen: v7x
topology: tpu7x:2x2x1
jax: 0.10.0
libtpu: 0.0.40
codegen_flags: <defaults>
</compile_context>

<pallas_src>
import jax
import jax.numpy as jnp
from jax.experimental import pallas as pl
from jax.experimental.pallas import tpu as pltpu

INPUT_SIZE = 2048
HIDDEN = 128
OUTPUT_SIZE = 10
OUT_PAD = 128   # lane-dense padded logits width
MAX_TM = 512    # batch-tile cap: 2 double-buffered fp32 x tiles = 8 MiB, safe on
                # v7x's 64 MiB VMEM / 32 MiB scoped default alongside ~0.6 MiB weights


def policy_kernel(x_ref, w1_ref, b1_ref, w2_ref, b2_ref, o_ref):
    # x: (TM, INPUT_SIZE) f32      w1: (INPUT_SIZE, HIDDEN) bf16   b1: (1, HIDDEN) f32
    # w2: (HIDDEN, OUT_PAD) bf16   b2: (1, OUT_PAD) f32            o: (TM, OUT_PAD) f32
    x = x_ref[...].astype(jnp.bfloat16)                      # bf16 operands -> single MXU pass
    h = jnp.dot(x, w1_ref[...], preferred_element_type=jnp.float32) + b1_ref[...]
    h = jnp.maximum(h, 0.0).astype(jnp.bfloat16)             # ReLU, back to bf16 for the MXU
    logits = jnp.dot(h, w2_ref[...], preferred_element_type=jnp.float32) + b2_ref[...]

    # Mask the zero-padded lanes so softmax assigns them ~0 probability.
    lane = jax.lax.broadcasted_iota(jnp.int32, logits.shape, dimension=1)
    logits = jnp.where(lane < OUTPUT_SIZE, logits, -1e30)

    m = jnp.max(logits, axis=-1, keepdims=True)
    e = jnp.exp(logits - m)
    denom = jnp.sum(e, axis=-1, keepdims=True)
    o_ref[...] = e * pl.reciprocal(denom, approx=True)       # EUP vrcp, free slot


def pack_params(w1_f32, b1_f32, w2_f32, b2_f32):
    """One-time packing of PyTorch-layout params into kernel layout (hoisted out
    of the per-call path)."""
    w1 = w1_f32.astype(jnp.bfloat16)                                   # (2048, 128)
    b1 = b1_f32.reshape(1, HIDDEN).astype(jnp.float32)                 # (1, 128)
    w2 = (jnp.zeros((HIDDEN, OUT_PAD), jnp.float32)
          .at[:, :OUTPUT_SIZE].set(w2_f32)).astype(jnp.bfloat16)       # (128, 128)
    b2 = (jnp.zeros((1, OUT_PAD), jnp.float32)
          .at[0, :OUTPUT_SIZE].set(b2_f32))                            # (1, 128)
    return w1, b1, w2, b2


def policy_forward(x, w1_bf16, b1_row, w2p_bf16, b2p_row):
    B = x.shape[0]
    tm = min(MAX_TM, ((B + 7) // 8) * 8)          # (8,128) sublane alignment
    b_pad = ((B + tm - 1) // tm) * tm
    if b_pad != B:
        x = jnp.pad(x, ((0, b_pad - B), (0, 0)))
    grid = (b_pad // tm,)

    cost = pl.CostEstimate(
        flops=2 * b_pad * INPUT_SIZE * HIDDEN + 2 * b_pad * HIDDEN * OUT_PAD,
        transcendentals=b_pad * OUT_PAD + b_pad,
        bytes_accessed=(x.size * 4 + w1_bf16.size * 2 + w2p_bf16.size * 2
                        + b1_row.size * 4 + b2p_row.size * 4 + b_pad * OUT_PAD * 4),
    )

    out_padded = pl.pallas_call(
        policy_kernel,
        out_shape=jax.ShapeDtypeStruct((b_pad, OUT_PAD), jnp.float32),
        grid_spec=pltpu.PrefetchScalarGridSpec(
            num_scalar_prefetch=0,
            grid=grid,
            in_specs=[
                pl.BlockSpec((tm, INPUT_SIZE), lambda i: (i, 0)),       # x batch tile
                pl.BlockSpec((INPUT_SIZE, HIDDEN), lambda i: (0, 0)),   # w1 VMEM-resident
                pl.BlockSpec((1, HIDDEN), lambda i: (0, 0)),            # b1 VMEM-resident
                pl.BlockSpec((HIDDEN, OUT_PAD), lambda i: (0, 0)),      # w2 VMEM-resident
                pl.BlockSpec((1, OUT_PAD), lambda i: (0, 0)),           # b2 VMEM-resident
            ],
            out_specs=pl.BlockSpec((tm, OUT_PAD), lambda i: (i, 0)),
        ),
        compiler_params=pltpu.CompilerParams(
            dimension_semantics=("parallel",),   # batch tiles shard across v7x's 2 TCs
        ),
        cost_estimate=cost,
    )(x, w1_bf16, b1_row, w2p_bf16, b2p_row)

    return out_padded[:B, :OUTPUT_SIZE]


def init_params(key):
    # Mimic PyTorch nn.Linear default init: U(-1/sqrt(fan_in), 1/sqrt(fan_in)).
    k1, k2, k3, k4 = jax.random.split(key, 4)
    bound1 = 1.0 / (INPUT_SIZE ** 0.5)
    bound2 = 1.0 / (HIDDEN ** 0.5)
    w1 = jax.random.uniform(k1, (INPUT_SIZE, HIDDEN), jnp.float32, -bound1, bound1)
    b1 = jax.random.uniform(k2, (HIDDEN,), jnp.float32, -bound1, bound1)
    w2 = jax.random.uniform(k3, (HIDDEN, OUTPUT_SIZE), jnp.float32, -bound2, bound2)
    b2 = jax.random.uniform(k4, (OUTPUT_SIZE,), jnp.float32, -bound2, bound2)
    return w1, b1, w2, b2


if __name__ == "__main__":
    key = jax.random.PRNGKey(0)
    kx, kp = jax.random.split(key)
    B = 8
    x = jax.random.normal(kx, (B, INPUT_SIZE), jnp.float32)

    w1, b1, w2, b2 = init_params(kp)
    # Pack once (hoisted out of the forward path).
    w1_k, b1_k, w2_k, b2_k = pack_params(w1, b1, w2, b2)

    out = policy_forward(x, w1_k, b1_k, w2_k, b2_k)
    out = jax.block_until_ready(out)

    # Reference in plain JAX, using the same bf16 operand quantization + fp32
    # accumulation the kernel performs (so tolerances stay tight).
    xb = x.astype(jnp.bfloat16).astype(jnp.float32)
    w1f = w1_k.astype(jnp.float32)
    h_ref = jnp.maximum(xb @ w1f + b1_k, 0.0)
    hb = h_ref.astype(jnp.bfloat16).astype(jnp.float32)
    w2f = w2_k[:, :OUTPUT_SIZE].astype(jnp.float32)
    logits_ref = hb @ w2f + b2_k[0, :OUTPUT_SIZE]
    ref = jax.nn.softmax(logits_ref, axis=-1)

    assert out.shape == (B, OUTPUT_SIZE)
    # approx reciprocal contributes ~2^-12 relative error to the normalization.
    assert jnp.allclose(out, ref, atol=2e-3, rtol=5e-3)
    assert jnp.allclose(jnp.sum(out, axis=-1), 1.0, atol=2e-3)

    print("KERNEL_OK")
</pallas_src>

<mosaic_0001>
module attributes {stable_mosaic.version = 11 : i64} {
  func.func @policy_kernel(%arg0: i32, %arg1: memref<8x2048xf32, #tpu.memory_space<vmem>>, %arg2: memref<2048x128xbf16, #tpu.memory_space<vmem>>, %arg3: memref<1x128xf32, #tpu.memory_space<vmem>>, %arg4: memref<128x128xbf16, #tpu.memory_space<vmem>>, %arg5: memref<1x128xf32, #tpu.memory_space<vmem>>, %arg6: memref<8x128xf32, #tpu.memory_space<vmem>>) attributes {dimension_semantics = [#tpu.dimension_semantics<parallel>], iteration_bounds = array<i64: 1>, scalar_prefetch = 0 : i64, scratch_operands = 0 : i64, tpu.core_type = #tpu.core_type<tc>, window_params = [{transform_indices = @transform_0, window_bounds = array<i64: 8, 2048>}, {pipeline_mode = #tpu.pipeline_mode<synchronous>, transform_indices = @transform_1, window_bounds = array<i64: 2048, 128>}, {pipeline_mode = #tpu.pipeline_mode<synchronous>, transform_indices = @transform_2, window_bounds = array<i64: 1, 128>}, {pipeline_mode = #tpu.pipeline_mode<synchronous>, transform_indices = @transform_3, window_bounds = array<i64: 128, 128>}, {pipeline_mode = #tpu.pipeline_mode<synchronous>, transform_indices = @transform_4, window_bounds = array<i64: 1, 128>}, {transform_indices = @transform_5, window_bounds = array<i64: 8, 128>}]} {
    %c0 = arith.constant 0 : index
    %c0_0 = arith.constant 0 : index
    %0 = vector.load %arg1[%c0, %c0_0] : memref<8x2048xf32, #tpu.memory_space<vmem>>, vector<8x2048xf32>
    %1 = arith.truncf %0 : vector<8x2048xf32> to vector<8x2048xbf16>
    %c0_1 = arith.constant 0 : index
    %c0_2 = arith.constant 0 : index
    %2 = vector.load %arg2[%c0_1, %c0_2] : memref<2048x128xbf16, #tpu.memory_space<vmem>>, vector<2048x128xbf16>
    %cst = arith.constant dense<0.000000e+00> : vector<8x128xf32>
    %3 = tpu.matmul %1, %2, %cst {dimension_numbers = #tpu.dot_dimension_numbers<[1], [0], [0], [1], [0, 0, 1, 1], [], []>} : vector<8x2048xbf16>, vector<2048x128xbf16>, vector<8x128xf32> -> vector<8x128xf32>
    %c0_3 = arith.constant 0 : index
    %c0_4 = arith.constant 0 : index
    %4 = vector.load %arg3[%c0_3, %c0_4] : memref<1x128xf32, #tpu.memory_space<vmem>>, vector<1x128xf32>
    %5 = vector.broadcast %4 : vector<1x128xf32> to vector<8x128xf32>
    %6 = arith.addf %3, %5 : vector<8x128xf32>
    %cst_5 = arith.constant 0.000000e+00 : f32
    %7 = vector.broadcast %cst_5 : f32 to vector<8x128xf32>
    %8 = arith.maximumf %6, %7 : vector<8x128xf32>
    %9 = arith.truncf %8 : vector<8x128xf32> to vector<8x128xbf16>
    %c0_6 = arith.constant 0 : index
    %c0_7 = arith.constant 0 : index
    %10 = vector.load %arg4[%c0_6, %c0_7] : memref<128x128xbf16, #tpu.memory_space<vmem>>, vector<128x128xbf16>
    %cst_8 = arith.constant dense<0.000000e+00> : vector<8x128xf32>
    %11 = tpu.matmul %9, %10, %cst_8 {dimension_numbers = #tpu.dot_dimension_numbers<[1], [0], [0], [1], [0, 0, 1, 1], [], []>} : vector<8x128xbf16>, vector<128x128xbf16>, vector<8x128xf32> -> vector<8x128xf32>
    %c0_9 = arith.constant 0 : index
    %c0_10 = arith.constant 0 : index
    %12 = vector.load %arg5[%c0_9, %c0_10] : memref<1x128xf32, #tpu.memory_space<vmem>>, vector<1x128xf32>
    %13 = vector.broadcast %12 : vector<1x128xf32> to vector<8x128xf32>
    %14 = arith.addf %11, %13 : vector<8x128xf32>
    %15 = tpu.iota {dimensions = array<i32: 1>} : vector<8x128xi32>
    %c10_i32 = arith.constant 10 : i32
    %16 = vector.broadcast %c10_i32 : i32 to vector<8x128xi32>
    %17 = arith.cmpi slt, %15, %16 : vector<8x128xi32>
    %cst_11 = arith.constant -1.000000e+30 : f32
    %18 = vector.broadcast %cst_11 : f32 to vector<8x128xf32>
    %19 = arith.select %17, %14, %18 : vector<8x128xi1>, vector<8x128xf32>
    %cst_12 = arith.constant dense<0xFF800000> : vector<8xf32>
    %20 = vector.multi_reduction <maximumf>, %19, %cst_12 [1] : vector<8x128xf32> to vector<8xf32>
    %21 = vector.shape_cast %20 : vector<8xf32> to vector<8x1xf32>
    %22 = vector.broadcast %21 : vector<8x1xf32> to vector<8x128xf32>
    %23 = arith.subf %19, %22 : vector<8x128xf32>
    %24 = math.exp %23 : vector<8x128xf32>
    %cst_13 = arith.constant dense<0.000000e+00> : vector<8xf32>
    %25 = vector.multi_reduction <add>, %24, %cst_13 [1] : vector<8x128xf32> to vector<8xf32>
    %26 = vector.shape_cast %25 : vector<8xf32> to vector<8x1xf32>
    %27 = tpu.reciprocal %26 {approx = true} : vector<8x1xf32> -> vector<8x1xf32>
    %28 = vector.broadcast %27 : vector<8x1xf32> to vector<8x128xf32>
    %29 = arith.mulf %24, %28 : vector<8x128xf32>
    %c0_14 = arith.constant 0 : index
    %c0_15 = arith.constant 0 : index
    %30 = vector.load %arg6[%c0_14, %c0_15] : memref<8x128xf32, #tpu.memory_space<vmem>>, vector<8x128xf32>
    tpu.vector_store %arg6[%c0_14, %c0_15], %29 {strides = array<i32>} : memref<8x128xf32, #tpu.memory_space<vmem>>, vector<8x128xf32>,
    return
  }
  func.func @transform_0(%arg0: i32) -> (i32, i32) {
    %c0_i32 = arith.constant 0 : i32
    %c0_i32_0 = arith.constant 0 : i32
    return %arg0, %c0_i32 : i32, i32
  }
  func.func @transform_1(%arg0: i32) -> (i32, i32) {
    %c0_i32 = arith.constant 0 : i32
    %c0_i32_0 = arith.constant 0 : i32
    %c0_i32_1 = arith.constant 0 : i32
    return %c0_i32, %c0_i32_0 : i32, i32
  }
  func.func @transform_2(%arg0: i32) -> (i32, i32) {
    %c0_i32 = arith.constant 0 : i32
    %c0_i32_0 = arith.constant 0 : i32
    %c0_i32_1 = arith.constant 0 : i32
    return %c0_i32, %c0_i32_0 : i32, i32
  }
  func.func @transform_3(%arg0: i32) -> (i32, i32) {
    %c0_i32 = arith.constant 0 : i32
    %c0_i32_0 = arith.constant 0 : i32
    %c0_i32_1 = arith.constant 0 : i32
    return %c0_i32, %c0_i32_0 : i32, i32
  }
  func.func @transform_4(%arg0: i32) -> (i32, i32) {
    %c0_i32 = arith.constant 0 : i32
    %c0_i32_0 = arith.constant 0 : i32
    %c0_i32_1 = arith.constant 0 : i32
    return %c0_i32, %c0_i32_0 : i32, i32
  }
  func.func @transform_5(%arg0: i32) -> (i32, i32) {
    %c0_i32 = arith.constant 0 : i32
    %c0_i32_0 = arith.constant 0 : i32
    return %arg0, %c0_i32 : i32, i32
  }
}

</mosaic_0001>

<llo_original>
// kernel: tpu_custom_call.1
$region0: #{tpu_custom_call.1}
  #allocation0 [shape = 'u32[]', space=smem, size = 0x4, offset = 0x4, fixed_abs, tag = 'smem constant byte address 0x4 - core index']
  #allocation1 [shape = 'u32[144,128]{1,0:T(1,128)}', space=vmem, size = 0x12000, scoped, tag = 'internal scratch']
  %s0 = inlined_call_operand.hbm [shape: f32[8,2048], index: 0, kind: input, shape index: {}]
  %s1 = inlined_call_operand.hbm [shape: bf16[2048,128], index: 1, kind: input, shape index: {}]
  %s2 = inlined_call_operand.vmem [shape: f32[1,128], index: 2, kind: input, shape index: {}]
  %s3 = inlined_call_operand.hbm [shape: bf16[128,128], index: 3, kind: input, shape index: {}]
  %s4 = inlined_call_operand.vmem [shape: f32[1,128], index: 4, kind: input, shape index: {}]
  %s5 = inlined_call_operand.hbm [shape: f32[8,128], index: 5, kind: output, shape index: {}]
  %s6 = sld [smem:[#allocation0]]
  $region42: #{tpu_custom_call.1} parent=0
    _
  %s8 = ssub.s32 1, %s6
  %s9 = scalar_select 0, %s8, %s6
  $region1: #{tpu_custom_call.1} parent=0
    #allocation2 [shape = 'u8[65536]{0}', space=vmem, size = 0x10000, scoped, tag = 'input window, operand 0, single buffered']
    #allocation3 [shape = 's32[1]{0}', space=sflag, size = 0x4, scoped, tag = 'scoped memory for tpu_custom_call.1']
    #allocation4 [shape = 's32[1]{0}', space=sflag, size = 0x4, scoped, tag = 'scoped memory for tpu_custom_call.1']
    #allocation5 [shape = 'u8[524288]{0}', space=vmem, size = 0x80000, scoped, tag = 'input window, operand 1, single buffered']
    #allocation6 [shape = 's32[1]{0}', space=sflag, size = 0x4, scoped, tag = 'scoped memory for tpu_custom_call.1']
    #allocation7 [shape = 'u8[32768]{0}', space=vmem, size = 0x8000, scoped, tag = 'input window, operand 3, single buffered']
    #allocation8 [shape = 'u8[4096]{0}', space=vmem, size = 0x1000, scoped, tag = 'output window, operand 0, single buffered']
    %10 = vsyncpa [#allocation3], 0
    %11 = vsyncpa [#allocation6], 0
    %12 = vsyncpa [#allocation4], 0
    // Predicated region
    $region2: #{tpu_custom_call.1} parent=1 // pred_check
      _
    $region3: #{tpu_custom_call.1} parent=1 // pred_check_branch
      %14 = sbr.rel (0) target = $region5
    $region4: #{tpu_custom_call.1} parent=1 // pred_region
      %s16 = ssub.s32 2048, 2048
      %17 = vsyncadd [#allocation3], %s16
      %s19 = sshll.u32 [#allocation2], 4
      %s20 = int_to_ptr.vmem [resolvable:$true] %s19
      %22 = dma.hbm_to_vmem [thread:$0]  %s0, 2048, %s20, [#allocation3]
    $region5: #{tpu_custom_call.1} parent=1 // pred_fallthru
      _
    // Predicated region
    $region6: #{tpu_custom_call.1} parent=1 // pred_check
      _
    $region7: #{tpu_custom_call.1} parent=1 // pred_check_branch
      %24 = sbr.rel (0) target = $region9
    $region8: #{tpu_custom_call.1} parent=1 // pred_region
      %s26 = ssub.s32 16384, 16384
      %27 = vsyncadd [#allocation6], %s26
      %s28 = sshll.u32 [#allocation5], 4
      %s29 = int_to_ptr.vmem [resolvable:$true] %s28
      %34 = dma.hbm_to_vmem [thread:$0]  %s1, 16384, %s29, [#allocation6], 64, 64, 4
    $region9: #{tpu_custom_call.1} parent=1 // pred_fallthru
      _
    // Predicated region
    $region10: #{tpu_custom_call.1} parent=1 // pred_check
      _
    $region11: #{tpu_custom_call.1} parent=1 // pred_check_branch
      %36 = sbr.rel (0) target = $region13
    $region12: #{tpu_custom_call.1} parent=1 // pred_region
      _
    $region13: #{tpu_custom_call.1} parent=1 // pred_fallthru
      _
    // Predicated region
    $region14: #{tpu_custom_call.1} parent=1 // pred_check
      _
    $region15: #{tpu_custom_call.1} parent=1 // pred_check_branch
      %38 = sbr.rel (0) target = $region17
    $region16: #{tpu_custom_call.1} parent=1 // pred_region
      %s40 = ssub.s32 1024, 1024
      %41 = vsyncadd [#allocation6], %s40
      %s42 = sshll.u32 [#allocation7], 4
      %s43 = int_to_ptr.vmem [resolvable:$true] %s42
      %48 = dma.hbm_to_vmem [thread:$0]  %s3, 1024, %s43, [#allocation6], 64, 64, 4
    $region17: #{tpu_custom_call.1} parent=1 // pred_fallthru
      _
    // Predicated region
    $region18: #{tpu_custom_call.1} parent=1 // pred_check
      _
    $region19: #{tpu_custom_call.1} parent=1 // pred_check_branch
      %50 = sbr.rel (0) target = $region21
    $region20: #{tpu_custom_call.1} parent=1 // pred_region
      _
    $region21: #{tpu_custom_call.1} parent=1 // pred_fallthru
      _
    // Predicated region
    $region22: #{tpu_custom_call.1} parent=1 // pred_check
      _
    $region23: #{tpu_custom_call.1} parent=1 // pred_check_branch
      %52 = sbr.rel (0) target = $region25
    $region24: #{tpu_custom_call.1} parent=1 // pred_region
      %53 = dma.done [#allocation3], 2048
    $region25: #{tpu_custom_call.1} parent=1 // pred_fallthru
      _
    // Predicated region
    $region26: #{tpu_custom_call.1} parent=1 // pred_check
      _
    $region27: #{tpu_custom_call.1} parent=1 // pred_check_branch
      %55 = sbr.rel (0) target = $region29
    $region28: #{tpu_custom_call.1} parent=1 // pred_region
      %56 = dma.done [#allocation6], 16384
    $region29: #{tpu_custom_call.1} parent=1 // pred_fallthru
      _
    // Predicated region
    $region30: #{tpu_custom_call.1} parent=1 // pred_check
      _
    $region31: #{tpu_custom_call.1} parent=1 // pred_check_branch
      %58 = sbr.rel (0) target = $region33
    $region32: #{tpu_custom_call.1} parent=1 // pred_region
      %59 = dma.done [#allocation6], 1024
    $region33: #{tpu_custom_call.1} parent=1 // pred_fallthru
      _
    %v61 = vld [vmem:[#allocation2] sm:$0xff]
    %v62 = vld [vmem:[#allocation2 + $0x8] sm:$0xff]
    %v63 = vld [vmem:[#allocation2 + $0x10] sm:$0xff]
    %v64 = vld [vmem:[#allocation2 + $0x18] sm:$0xff]
    %v65 = vld [vmem:[#allocation2 + $0x20] sm:$0xff]
    %v66 = vld [vmem:[#allocation2 + $0x28] sm:$0xff]
    %v67 = vld [vmem:[#allocation2 + $0x30] sm:$0xff]
    %v68 = vld [vmem:[#allocation2 + $0x38] sm:$0xff]
    %v69 = vld [vmem:[#allocation2 + $0x40] sm:$0xff]
    %v70 = vld [vmem:[#allocation2 + $0x48] sm:$0xff]
    %v71 = vld [vmem:[#allocation2 + $0x50] sm:$0xff]
    %v72 = vld [vmem:[#allocation2 + $0x58] sm:$0xff]
    %v73 = vld [vmem:[#allocation2 + $0x60] sm:$0xff]
    %v74 = vld [vmem:[#allocation2 + $0x68] sm:$0xff]
    %v75 = vld [vmem:[#allocation2 + $0x70] sm:$0xff]
    %v76 = vld [vmem:[#allocation2 + $0x78] sm:$0xff]
    %v77 = vpack.c.bf16 %v61, %v61
    %v78 = vpack.c.bf16 %v62, %v62
    %v79 = vpack.c.bf16 %v63, %v63
    %v80 = vpack.c.bf16 %v64, %v64
    %v81 = vpack.c.bf16 %v65, %v65
    %v82 = vpack.c.bf16 %v66, %v66
    %v83 = vpack.c.bf16 %v67, %v67
    %v84 = vpack.c.bf16 %v68, %v68
    %v85 = vpack.c.bf16 %v69, %v69
    %v86 = vpack.c.bf16 %v70, %v70
    %v87 = vpack.c.bf16 %v71, %v71
    %v88 = vpack.c.bf16 %v72, %v72
    %v89 = vpack.c.bf16 %v73, %v73
    %v90 = vpack.c.bf16 %v74, %v74
    %v91 = vpack.c.bf16 %v75, %v75
    %v92 = vpack.c.bf16 %v76, %v76
    %v93 = vld [vmem:[#allocation5] sm:$0xf]
    %v94 = vld [vmem:[#allocation5 + $0x4] sm:$0xf]
    %v95 = vld [vmem:[#allocation5 + $0x8] sm:$0xf]
    %v96 = vld [vmem:[#allocation5 + $0xc] sm:$0xf]
    %v97 = vld [vmem:[#allocation5 + $0x10] sm:$0xf]
    %v98 = vld [vmem:[#allocation5 + $0x14] sm:$0xf]
    %v99 = vld [vmem:[#allocation5 + $0x18] sm:$0xf]
    %v100 = vld [vmem:[#allocation5 + $0x1c] sm:$0xf]
    %v101 = vld [vmem:[#allocation5 + $0x20] sm:$0xf]
    %v102 = vld [vmem:[#allocation5 + $0x24] sm:$0xf]
    %v103 = vld [vmem:[#allocation5 + $0x28] sm:$0xf]
    %v104 = vld [vmem:[#allocation5 + $0x2c] sm:$0xf]
    %v105 = vld [vmem:[#allocation5 + $0x30] sm:$0xf]
    %v106 = vld [vmem:[#allocation5 + $0x34] sm:$0xf]
    %v107 = vld [vmem:[#allocation5 + $0x38] sm:$0xf]
    %v108 = vld [vmem:[#allocation5 + $0x3c] sm:$0xf]
    %v109 = vld [vmem:[#allocation5 + $0x40] sm:$0xf]
    %v110 = vld [vmem:[#allocation5 + $0x44] sm:$0xf]
    %v111 = vld [vmem:[#allocation5 + $0x48] sm:$0xf]
    %v112 = vld [vmem:[#allocation5 + $0x4c] sm:$0xf]
    %v113 = vld [vmem:[#allocation5 + $0x50] sm:$0xf]
    %v114 = vld [vmem:[#allocation5 + $0x54] sm:$0xf]
    %v115 = vld [vmem:[#allocation5 + $0x58] sm:$0xf]
    %v116 = vld [vmem:[#allocation5 + $0x5c] sm:$0xf]
    %v117 = vld [vmem:[#allocation5 + $0x60] sm:$0xf]
    %v118 = vld [vmem:[#allocation5 + $0x64] sm:$0xf]
    %v119 = vld [vmem:[#allocation5 + $0x68] sm:$0xf]
    %v120 = vld [vmem:[#allocation5 + $0x6c] sm:$0xf]
    %v121 = vld [vmem:[#allocation5 + $0x70] sm:$0xf]
    %v122 = vld [vmem:[#allocation5 + $0x74] sm:$0xf]
    %v123 = vld [vmem:[#allocation5 + $0x78] sm:$0xf]
    %v124 = vld [vmem:[#allocation5 + $0x7c] sm:$0xf]
    %v125 = vld [vmem:[#allocation5 + $0x80] sm:$0xf]
    %v126 = vld [vmem:[#allocation5 + $0x84] sm:$0xf]
    %v127 = vld [vmem:[#allocation5 + $0x88] sm:$0xf]
    %v128 = vld [vmem:[#allocation5 + $0x8c] sm:$0xf]
    %v129 = vld [vmem:[#allocation5 + $0x90] sm:$0xf]
    %v130 = vld [vmem:[#allocation5 + $0x94] sm:$0xf]
    %v131 = vld [vmem:[#allocation5 + $0x98] sm:$0xf]
    %v132 = vld [vmem:[#allocation5 + $0x9c] sm:$0xf]
    %v133 = vld [vmem:[#allocation5 + $0xa0] sm:$0xf]
    %v134 = vld [vmem:[#allocation5 + $0xa4] sm:$0xf]
    %v135 = vld [vmem:[#allocation5 + $0xa8] sm:$0xf]
    %v136 = vld [vmem:[#allocation5 + $0xac] sm:$0xf]
    %v137 = vld [vmem:[#allocation5 + $0xb0] sm:$0xf]
    %v138 = vld [vmem:[#allocation5 + $0xb4] sm:$0xf]
    %v139 = vld [vmem:[#allocation5 + $0xb8] sm:$0xf]
    %v140 = vld [vmem:[#allocation5 + $0xbc] sm:$0xf]
    %v141 = vld [vmem:[#allocation5 + $0xc0] sm:$0xf]
    %v142 = vld [vmem:[#allocation5 + $0xc4] sm:$0xf]
    %v143 = vld [vmem:[#allocation5 + $0xc8] sm:$0xf]
    %v144 = vld [vmem:[#allocation5 + $0xcc] sm:$0xf]
    %v145 = vld [vmem:[#allocation5 + $0xd0] sm:$0xf]
    %v146 = vld [vmem:[#allocation5 + $0xd4] sm:$0xf]
    %v147 = vld [vmem:[#allocation5 + $0xd8] sm:$0xf]
    %v148 = vld [vmem:[#allocation5 + $0xdc] sm:$0xf]
    %v149 = vld [vmem:[#allocation5 + $0xe0] sm:$0xf]
    %v150 = vld [vmem:[#allocation5 + $0xe4] sm:$0xf]
    %v151 = vld [vmem:[#allocation5 + $0xe8] sm:$0xf]
    %v152 = vld [vmem:[#allocation5 + $0xec] sm:$0xf]
    %v153 = vld [vmem:[#allocation5 + $0xf0] sm:$0xf]
    %v154 = vld [vmem:[#allocation5 + $0xf4] sm:$0xf]
    %v155 = vld [vmem:[#allocation5 + $0xf8] sm:$0xf]
    %v156 = vld [vmem:[#allocation5 + $0xfc] sm:$0xf]
    %v157 = vld [vmem:[#allocation5 + $0x100] sm:$0xf]
    %v158 = vld [vmem:[#allocation5 + $0x104] sm:$0xf]
    %v159 = vld [vmem:[#allocation5 + $0x108] sm:$0xf]
    %v160 = vld [vmem:[#allocation5 + $0x10c] sm:$0xf]
    %v161 = vld [vmem:[#allocation5 + $0x110] sm:$0xf]
    %v162 = vld [vmem:[#allocation5 + $0x114] sm:$0xf]
    %v163 = vld [vmem:[#allocation5 + $0x118] sm:$0xf]
    %v164 = vld [vmem:[#allocation5 + $0x11c] sm:$0xf]
    %v165 = vld [vmem:[#allocation5 + $0x120] sm:$0xf]
    %v166 = vld [vmem:[#allocation5 + $0x124] sm:$0xf]
    %v167 = vld [vmem:[#allocation5 + $0x128] sm:$0xf]
    %v168 = vld [vmem:[#allocation5 + $0x12c] sm:$0xf]
    %v169 = vld [vmem:[#allocation5 + $0x130] sm:$0xf]
    %v170 = vld [vmem:[#allocation5 + $0x134] sm:$0xf]
    %v171 = vld [vmem:[#allocation5 + $0x138] sm:$0xf]
    %v172 = vld [vmem:[#allocation5 + $0x13c] sm:$0xf]
    %v173 = vld [vmem:[#allocation5 + $0x140] sm:$0xf]
    %v174 = vld [vmem:[#allocation5 + $0x144] sm:$0xf]
    %v175 = vld [vmem:[#allocation5 + $0x148] sm:$0xf]
    %v176 = vld [vmem:[#allocation5 + $0x14c] sm:$0xf]
    %v177 = vld [vmem:[#allocation5 + $0x150] sm:$0xf]
    %v178 = vld [vmem:[#allocation5 + $0x154] sm:$0xf]
    %v179 = vld [vmem:[#allocation5 + $0x158] sm:$0xf]
    %v180 = vld [vmem:[#allocation5 + $0x15c] sm:$0xf]
    %v181 = vld [vmem:[#allocation5 + $0x160] sm:$0xf]
    %v182 = vld [vmem:[#allocation5 + $0x164] sm:$0xf]
    %v183 = vld [vmem:[#allocation5 + $0x168] sm:$0xf]
    %v184 = vld [vmem:[#allocation5 + $0x16c] sm:$0xf]
    %v185 = vld [vmem:[#allocation5 + $0x170] sm:$0xf]
    %v186 = vld [vmem:[#allocation5 + $0x174] sm:$0xf]
    %v187 = vld [vmem:[#allocation5 + $0x178] sm:$0xf]
    %v188 = vld [vmem:[#allocation5 + $0x17c] sm:$0xf]
    %v189 = vld [vmem:[#allocation5 + $0x180] sm:$0xf]
    %v190 = vld [vmem:[#allocation5 + $0x184] sm:$0xf]
    %v191 = vld [vmem:[#allocation5 + $0x188] sm:$0xf]
    %v192 = vld [vmem:[#allocation5 + $0x18c] sm:$0xf]
    %v193 = vld [vmem:[#allocation5 + $0x190] sm:$0xf]
    %v194 = vld [vmem:[#allocation5 + $0x194] sm:$0xf]
    %v195 = vld [vmem:[#allocation5 + $0x198] sm:$0xf]
    %v196 = vld [vmem:[#allocation5 + $0x19c] sm:$0xf]
    %v197 = vld [vmem:[#allocation5 + $0x1a0] sm:$0xf]
    %v198 = vld [vmem:[#allocation5 + $0x1a4] sm:$0xf]
    %v199 = vld [vmem:[#allocation5 + $0x1a8] sm:$0xf]
    %v200 = vld [vmem:[#allocation5 + $0x1ac] sm:$0xf]
    %v201 = vld [vmem:[#allocation5 + $0x1b0] sm:$0xf]
    %v202 = vld [vmem:[#allocation5 + $0x1b4] sm:$0xf]
    %v203 = vld [vmem:[#allocation5 + $0x1b8] sm:$0xf]
    %v204 = vld [vmem:[#allocation5 + $0x1bc] sm:$0xf]
    %v205 = vld [vmem:[#allocation5 + $0x1c0] sm:$0xf]
    %v206 = vld [vmem:[#allocation5 + $0x1c4] sm:$0xf]
    %v207 = vld [vmem:[#allocation5 + $0x1c8] sm:$0xf]
    %v208 = vld [vmem:[#allocation5 + $0x1cc] sm:$0xf]
    %v209 = vld [vmem:[#allocation5 + $0x1d0] sm:$0xf]
    %v210 = vld [vmem:[#allocation5 + $0x1d4] sm:$0xf]
    %v211 = vld [vmem:[#allocation5 + $0x1d8] sm:$0xf]
    %v212 = vld [vmem:[#allocation5 + $0x1dc] sm:$0xf]
    %v213 = vld [vmem:[#allocation5 + $0x1e0] sm:$0xf]
    %v214 = vld [vmem:[#allocation5 + $0x1e4] sm:$0xf]
    %v215 = vld [vmem:[#allocation5 + $0x1e8] sm:$0xf]
    %v216 = vld [vmem:[#allocation5 + $0x1ec] sm:$0xf]
    %v217 = vld [vmem:[#allocation5 + $0x1f0] sm:$0xf]
    %v218 = vld [vmem:[#allocation5 + $0x1f4] sm:$0xf]
    %v219 = vld [vmem:[#allocation5 + $0x1f8] sm:$0xf]
    %v220 = vld [vmem:[#allocation5 + $0x1fc] sm:$0xf]
    %v221 = vld [vmem:[#allocation5 + $0x200] sm:$0xf]
    %v222 = vld [vmem:[#allocation5 + $0x204] sm:$0xf]
    %v223 = vld [vmem:[#allocation5 + $0x208] sm:$0xf]
    %v224 = vld [vmem:[#allocation5 + $0x20c] sm:$0xf]
    %v225 = vld [vmem:[#allocation5 + $0x210] sm:$0xf]
    %v226 = vld [vmem:[#allocation5 + $0x214] sm:$0xf]
    %v227 = vld [vmem:[#allocation5 + $0x218] sm:$0xf]
    %v228 = vld [vmem:[#allocation5 + $0x21c] sm:$0xf]
    %v229 = vld [vmem:[#allocation5 + $0x220] sm:$0xf]
    %v230 = vld [vmem:[#allocation5 + $0x224] sm:$0xf]
    %v231 = vld [vmem:[#allocation5 + $0x228] sm:$0xf]
    %v232 = vld [vmem:[#allocation5 + $0x22c] sm:$0xf]
    %v233 = vld [vmem:[#allocation5 + $0x230] sm:$0xf]
    %v234 = vld [vmem:[#allocation5 + $0x234] sm:$0xf]
    %v235 = vld [vmem:[#allocation5 + $0x238] sm:$0xf]
    %v236 = vld [vmem:[#allocation5 + $0x23c] sm:$0xf]
    %v237 = vld [vmem:[#allocation5 + $0x240] sm:$0xf]
    %v238 = vld [vmem:[#allocation5 + $0x244] sm:$0xf]
    %v239 = vld [vmem:[#allocation5 + $0x248] sm:$0xf]
    %v240 = vld [vmem:[#allocation5 + $0x24c] sm:$0xf]
    %v241 = vld [vmem:[#allocation5 + $0x250] sm:$0xf]
    %v242 = vld [vmem:[#allocation5 + $0x254] sm:$0xf]
    %v243 = vld [vmem:[#allocation5 + $0x258] sm:$0xf]
    %v244 = vld [vmem:[#allocation5 + $0x25c] sm:$0xf]
    %v245 = vld [vmem:[#allocation5 + $0x260] sm:$0xf]
    %v246 = vld [vmem:[#allocation5 + $0x264] sm:$0xf]
    %v247 = vld [vmem:[#allocation5 + $0x268] sm:$0xf]
    %v248 = vld [vmem:[#allocation5 + $0x26c] sm:$0xf]
    %v249 = vld [vmem:[#allocation5 + $0x270] sm:$0xf]
    %v250 = vld [vmem:[#allocation5 + $0x274] sm:$0xf]
    %v251 = vld [vmem:[#allocation5 + $0x278] sm:$0xf]
    %v252 = vld [vmem:[#allocation5 + $0x27c] sm:$0xf]
    %v253 = vld [vmem:[#allocation5 + $0x280] sm:$0xf]
    %v254 = vld [vmem:[#allocation5 + $0x284] sm:$0xf]
    %v255 = vld [vmem:[#allocation5 + $0x288] sm:$0xf]
    %v256 = vld [vmem:[#allocation5 + $0x28c] sm:$0xf]
    %v257 = vld [vmem:[#allocation5 + $0x290] sm:$0xf]
    %v258 = vld [vmem:[#allocation5 + $0x294] sm:$0xf]
    %v259 = vld [vmem:[#allocation5 + $0x298] sm:$0xf]
    %v260 = vld [vmem:[#allocation5 + $0x29c] sm:$0xf]
    %v261 = vld [vmem:[#allocation5 + $0x2a0] sm:$0xf]
    %v262 = vld [vmem:[#allocation5 + $0x2a4] sm:$0xf]
    %v263 = vld [vmem:[#allocation5 + $0x2a8] sm:$0xf]
    %v264 = vld [vmem:[#allocation5 + $0x2ac] sm:$0xf]
    %v265 = vld [vmem:[#allocation5 + $0x2b0] sm:$0xf]
    %v266 = vld [vmem:[#allocation5 + $0x2b4] sm:$0xf]
    %v267 = vld [vmem:[#allocation5 + $0x2b8] sm:$0xf]
    %v268 = vld [vmem:[#allocation5 + $0x2bc] sm:$0xf]
    %v269 = vld [vmem:[#allocation5 + $0x2c0] sm:$0xf]
    %v270 = vld [vmem:[#allocation5 + $0x2c4] sm:$0xf]
    %v271 = vld [vmem:[#allocation5 + $0x2c8] sm:$0xf]
    %v272 = vld [vmem:[#allocation5 + $0x2cc] sm:$0xf]
    %v273 = vld [vmem:[#allocation5 + $0x2d0] sm:$0xf]
    %v274 = vld [vmem:[#allocation5 + $0x2d4] sm:$0xf]
    %v275 = vld [vmem:[#allocation5 + $0x2d8] sm:$0xf]
    %v276 = vld [vmem:[#allocation5 + $0x2dc] sm:$0xf]
    %v277 = vld [vmem:[#allocation5 + $0x2e0] sm:$0xf]
    %v278 = vld [vmem:[#allocation5 + $0x2e4] sm:$0xf]
    %v279 = vld [vmem:[#allocation5 + $0x2e8] sm:$0xf]
    %v280 = vld [vmem:[#allocation5 + $0x2ec] sm:$0xf]
    %v281 = vld [vmem:[#allocation5 + $0x2f0] sm:$0xf]
    %v282 = vld [vmem:[#allocation5 + $0x2f4] sm:$0xf]
    %v283 = vld [vmem:[#allocation5 + $0x2f8] sm:$0xf]
    %v284 = vld [vmem:[#allocation5 + $0x2fc] sm:$0xf]
    %v285 = vld [vmem:[#allocation5 + $0x300] sm:$0xf]
    %v286 = vld [vmem:[#allocation5 + $0x304] sm:$0xf]
    %v287 = vld [vmem:[#allocation5 + $0x308] sm:$0xf]
    %v288 = vld [vmem:[#allocation5 + $0x30c] sm:$0xf]
    %v289 = vld [vmem:[#allocation5 + $0x310] sm:$0xf]
    %v290 = vld [vmem:[#allocation5 + $0x314] sm:$0xf]
    %v291 = vld [vmem:[#allocation5 + $0x318] sm:$0xf]
    %v292 = vld [vmem:[#allocation5 + $0x31c] sm:$0xf]
    %v293 = vld [vmem:[#allocation5 + $0x320] sm:$0xf]
    %v294 = vld [vmem:[#allocation5 + $0x324] sm:$0xf]
    %v295 = vld [vmem:[#allocation5 + $0x328] sm:$0xf]
    %v296 = vld [vmem:[#allocation5 + $0x32c] sm:$0xf]
    %v297 = vld [vmem:[#allocation5 + $0x330] sm:$0xf]
    %v298 = vld [vmem:[#allocation5 + $0x334] sm:$0xf]
    %v299 = vld [vmem:[#allocation5 + $0x338] sm:$0xf]
    %v300 = vld [vmem:[#allocation5 + $0x33c] sm:$0xf]
    %v301 = vld [vmem:[#allocation5 + $0x340] sm:$0xf]
    %v302 = vld [vmem:[#allocation5 + $0x344] sm:$0xf]
    %v303 = vld [vmem:[#allocation5 + $0x348] sm:$0xf]
    %v304 = vld [vmem:[#allocation5 + $0x34c] sm:$0xf]
    %v305 = vld [vmem:[#allocation5 + $0x350] sm:$0xf]
    %v306 = vld [vmem:[#allocation5 + $0x354] sm:$0xf]
    %v307 = vld [vmem:[#allocation5 + $0x358] sm:$0xf]
    %v308 = vld [vmem:[#allocation5 + $0x35c] sm:$0xf]
    %v309 = vld [vmem:[#allocation5 + $0x360] sm:$0xf]
    %v310 = vld [vmem:[#allocation5 + $0x364] sm:$0xf]
    %v311 = vld [vmem:[#allocation5 + $0x368] sm:$0xf]
    %v312 = vld [vmem:[#allocation5 + $0x36c] sm:$0xf]
    %v313 = vld [vmem:[#allocation5 + $0x370] sm:$0xf]
    %v314 = vld [vmem:[#allocation5 + $0x374] sm:$0xf]
    %v315 = vld [vmem:[#allocation5 + $0x378] sm:$0xf]
    %v316 = vld [vmem:[#allocation5 + $0x37c] sm:$0xf]
    %v317 = vld [vmem:[#allocation5 + $0x380] sm:$0xf]
    %v318 = vld [vmem:[#allocation5 + $0x384] sm:$0xf]
    %v319 = vld [vmem:[#allocation5 + $0x388] sm:$0xf]
    %v320 = vld [vmem:[#allocation5 + $0x38c] sm:$0xf]
    %v321 = vld [vmem:[#allocation5 + $0x390] sm:$0xf]
    %v322 = vld [vmem:[#allocation5 + $0x394] sm:$0xf]
    %v323 = vld [vmem:[#allocation5 + $0x398] sm:$0xf]
    %v324 = vld [vmem:[#allocation5 + $0x39c] sm:$0xf]
    %v325 = vld [vmem:[#allocation5 + $0x3a0] sm:$0xf]
    %v326 = vld [vmem:[#allocation5 + $0x3a4] sm:$0xf]
    %v327 = vld [vmem:[#allocation5 + $0x3a8] sm:$0xf]
    %v328 = vld [vmem:[#allocation5 + $0x3ac] sm:$0xf]
    %v329 = vld [vmem:[#allocation5 + $0x3b0] sm:$0xf]
    %v330 = vld [vmem:[#allocation5 + $0x3b4] sm:$0xf]
    %v331 = vld [vmem:[#allocation5 + $0x3b8] sm:$0xf]
    %v332 = vld [vmem:[#allocation5 + $0x3bc] sm:$0xf]
    %v333 = vld [vmem:[#allocation5 + $0x3c0] sm:$0xf]
    %v334 = vld [vmem:[#allocation5 + $0x3c4] sm:$0xf]
    %v335 = vld [vmem:[#allocation5 + $0x3c8] sm:$0xf]
    %v336 = vld [vmem:[#allocation5 + $0x3cc] sm:$0xf]
    %v337 = vld [vmem:[#allocation5 + $0x3d0] sm:$0xf]
    %v338 = vld [vmem:[#allocation5 + $0x3d4] sm:$0xf]
    %v339 = vld [vmem:[#allocation5 + $0x3d8] sm:$0xf]
    %v340 = vld [vmem:[#allocation5 + $0x3dc] sm:$0xf]
    %v341 = vld [vmem:[#allocation5 + $0x3e0] sm:$0xf]
    %v342 = vld [vmem:[#allocation5 + $0x3e4] sm:$0xf]
    %v343 = vld [vmem:[#allocation5 + $0x3e8] sm:$0xf]
    %v344 = vld [vmem:[#allocation5 + $0x3ec] sm:$0xf]
    %v345 = vld [vmem:[#allocation5 + $0x3f0] sm:$0xf]
    %v346 = vld [vmem:[#allocation5 + $0x3f4] sm:$0xf]
    %v347 = vld [vmem:[#allocation5 + $0x3f8] sm:$0xf]
    %v348 = vld [vmem:[#allocation5 + $0x3fc] sm:$0xf]
    %v349 = vld [vmem:[%s2] sm:$0x1]
    %v351 = vlaneseq
    %v352 = vshrl.u32 %v351, 7
    %v353 = vsub.s32 0, %v352
    %v354 = vrot.slane %v349, %v353
    %v612 = vunpack.c.l.b16 %v93
    %v613 = vunpack.c.l.b16 %v94
    %v614 = vunpack.c.l.b16 %v95
    %v615 = vunpack.c.l.b16 %v96
    %v616 = vunpack.c.l.b16 %v97
    %v617 = vunpack.c.l.b16 %v98
    %v618 = vunpack.c.l.b16 %v99
    %v619 = vunpack.c.l.b16 %v100
    %v620 = vunpack.c.l.b16 %v101
    %v621 = vunpack.c.l.b16 %v102
    %v622 = vunpack.c.l.b16 %v103
    %v623 = vunpack.c.l.b16 %v104
    %v624 = vunpack.c.l.b16 %v105
    %v625 = vunpack.c.l.b16 %v106
    %v626 = vunpack.c.l.b16 %v107
    %v627 = vunpack.c.l.b16 %v108
    %v628 = vunpack.c.l.b16 %v109
    %v629 = vunpack.c.l.b16 %v110
    %v630 = vunpack.c.l.b16 %v111
    %v631 = vunpack.c.l.b16 %v112
    %v632 = vunpack.c.l.b16 %v113
    %v633 = vunpack.c.l.b16 %v114
    %v634 = vunpack.c.l.b16 %v115
    %v635 = vunpack.c.l.b16 %v116
    %v636 = vunpack.c.l.b16 %v117
    %v637 = vunpack.c.l.b16 %v118
    %v638 = vunpack.c.l.b16 %v119
    %v639 = vunpack.c.l.b16 %v120
    %v640 = vunpack.c.l.b16 %v121
    %v641 = vunpack.c.l.b16 %v122
    %v642 = vunpack.c.l.b16 %v123
    %v643 = vunpack.c.l.b16 %v124
    %v644 = vunpack.c.l.b16 %v125
    %v645 = vunpack.c.l.b16 %v126
    %v646 = vunpack.c.l.b16 %v127
    %v647 = vunpack.c.l.b16 %v128
    %v648 = vunpack.c.l.b16 %v129
    %v649 = vunpack.c.l.b16 %v130
    %v650 = vunpack.c.l.b16 %v131
    %v651 = vunpack.c.l.b16 %v132
    %v652 = vunpack.c.l.b16 %v133
    %v653 = vunpack.c.l.b16 %v134
    %v654 = vunpack.c.l.b16 %v135
    %v655 = vunpack.c.l.b16 %v136
    %v656 = vunpack.c.l.b16 %v137
    %v657 = vunpack.c.l.b16 %v138
    %v658 = vunpack.c.l.b16 %v139
    %v659 = vunpack.c.l.b16 %v140
    %v660 = vunpack.c.l.b16 %v141
    %v661 = vunpack.c.l.b16 %v142
    %v662 = vunpack.c.l.b16 %v143
    %v663 = vunpack.c.l.b16 %v144
    %v664 = vunpack.c.l.b16 %v145
    %v665 = vunpack.c.l.b16 %v146
    %v666 = vunpack.c.l.b16 %v147
    %v667 = vunpack.c.l.b16 %v148
    %v668 = vunpack.c.l.b16 %v149
    %v669 = vunpack.c.l.b16 %v150
    %v670 = vunpack.c.l.b16 %v151
    %v671 = vunpack.c.l.b16 %v152
    %v672 = vunpack.c.l.b16 %v153
    %v673 = vunpack.c.l.b16 %v154
    %v674 = vunpack.c.l.b16 %v155
    %v675 = vunpack.c.l.b16 %v156
    %v676 = vunpack.c.l.b16 %v157
    %v677 = vunpack.c.l.b16 %v158
    %v678 = vunpack.c.l.b16 %v159
    %v679 = vunpack.c.l.b16 %v160
    %v680 = vunpack.c.l.b16 %v161
    %v681 = vunpack.c.l.b16 %v162
    %v682 = vunpack.c.l.b16 %v163
    %v683 = vunpack.c.l.b16 %v164
    %v684 = vunpack.c.l.b16 %v165
    %v685 = vunpack.c.l.b16 %v166
    %v686 = vunpack.c.l.b16 %v167
    %v687 = vunpack.c.l.b16 %v168
    %v688 = vunpack.c.l.b16 %v169
    %v689 = vunpack.c.l.b16 %v170
    %v690 = vunpack.c.l.b16 %v171
    %v691 = vunpack.c.l.b16 %v172
    %v692 = vunpack.c.l.b16 %v173
    %v693 = vunpack.c.l.b16 %v174
    %v694 = vunpack.c.l.b16 %v175
    %v695 = vunpack.c.l.b16 %v176
    %v696 = vunpack.c.l.b16 %v177
    %v697 = vunpack.c.l.b16 %v178
    %v698 = vunpack.c.l.b16 %v179
    %v699 = vunpack.c.l.b16 %v180
    %v700 = vunpack.c.l.b16 %v181
    %v701 = vunpack.c.l.b16 %v182
    %v702 = vunpack.c.l.b16 %v183
    %v703 = vunpack.c.l.b16 %v184
    %v704 = vunpack.c.l.b16 %v185
    %v705 = vunpack.c.l.b16 %v186
    %v706 = vunpack.c.l.b16 %v187
    %v707 = vunpack.c.l.b16 %v188
    %v708 = vunpack.c.l.b16 %v189
    %v709 = vunpack.c.l.b16 %v190
    %v710 = vunpack.c.l.b16 %v191
    %v711 = vunpack.c.l.b16 %v192
    %v712 = vunpack.c.l.b16 %v193
    %v713 = vunpack.c.l.b16 %v194
    %v714 = vunpack.c.l.b16 %v195
    %v715 = vunpack.c.l.b16 %v196
    %v716 = vunpack.c.l.b16 %v197
    %v717 = vunpack.c.l.b16 %v198
    %v718 = vunpack.c.l.b16 %v199
    %v719 = vunpack.c.l.b16 %v200
    %v720 = vunpack.c.l.b16 %v201
    %v721 = vunpack.c.l.b16 %v202
    %v722 = vunpack.c.l.b16 %v203
    %v723 = vunpack.c.l.b16 %v204
    %v724 = vunpack.c.l.b16 %v205
    %v725 = vunpack.c.l.b16 %v206
    %v726 = vunpack.c.l.b16 %v207
    %v727 = vunpack.c.l.b16 %v208
    %v728 = vunpack.c.l.b16 %v209
    %v729 = vunpack.c.l.b16 %v210
    %v730 = vunpack.c.l.b16 %v211
    %v731 = vunpack.c.l.b16 %v212
    %v732 = vunpack.c.l.b16 %v213
    %v733 = vunpack.c.l.b16 %v214
    %v734 = vunpack.c.l.b16 %v215
    %v735 = vunpack.c.l.b16 %v216
    %v736 = vunpack.c.l.b16 %v217
    %v737 = vunpack.c.l.b16 %v218
    %v738 = vunpack.c.l.b16 %v219
    %v739 = vunpack.c.l.b16 %v220
    %v740 = vunpack.c.l.b16 %v221
    %v741 = vunpack.c.l.b16 %v222
    %v742 = vunpack.c.l.b16 %v223
    %v743 = vunpack.c.l.b16 %v224
    %v744 = vunpack.c.l.b16 %v225
    %v745 = vunpack.c.l.b16 %v226
    %v746 = vunpack.c.l.b16 %v227
    %v747 = vunpack.c.l.b16 %v228
    %v748 = vunpack.c.l.b16 %v229
    %v749 = vunpack.c.l.b16 %v230
    %v750 = vunpack.c.l.b16 %v231
    %v751 = vunpack.c.l.b16 %v232
    %v752 = vunpack.c.l.b16 %v233
    %v753 = vunpack.c.l.b16 %v234
    %v754 = vunpack.c.l.b16 %v235
    %v755 = vunpack.c.l.b16 %v236
    %v756 = vunpack.c.l.b16 %v237
    %v757 = vunpack.c.l.b16 %v238
    %v758 = vunpack.c.l.b16 %v239
    %v759 = vunpack.c.l.b16 %v240
    %v760 = vunpack.c.l.b16 %v241
    %v761 = vunpack.c.l.b16 %v242
    %v762 = vunpack.c.l.b16 %v243
    %v763 = vunpack.c.l.b16 %v244
    %v764 = vunpack.c.l.b16 %v245
    %v765 = vunpack.c.l.b16 %v246
    %v766 = vunpack.c.l.b16 %v247
    %v767 = vunpack.c.l.b16 %v248
    %v768 = vunpack.c.l.b16 %v249
    %v769 = vunpack.c.l.b16 %v250
    %v770 = vunpack.c.l.b16 %v251
    %v771 = vunpack.c.l.b16 %v252
    %v772 = vunpack.c.l.b16 %v253
    %v773 = vunpack.c.l.b16 %v254
    %v774 = vunpack.c.l.b16 %v255
    %v775 = vunpack.c.l.b16 %v256
    %v776 = vunpack.c.l.b16 %v257
    %v777 = vunpack.c.l.b16 %v258
    %v778 = vunpack.c.l.b16 %v259
    %v779 = vunpack.c.l.b16 %v260
    %v780 = vunpack.c.l.b16 %v261
    %v781 = vunpack.c.l.b16 %v262
    %v782 = vunpack.c.l.b16 %v263
    %v783 = vunpack.c.l.b16 %v264
    %v784 = vunpack.c.l.b16 %v265
    %v785 = vunpack.c.l.b16 %v266
    %v786 = vunpack.c.l.b16 %v267
    %v787 = vunpack.c.l.b16 %v268
    %v788 = vunpack.c.l.b16 %v269
    %v789 = vunpack.c.l.b16 %v270
    %v790 = vunpack.c.l.b16 %v271
    %v791 = vunpack.c.l.b16 %v272
    %v792 = vunpack.c.l.b16 %v273
    %v793 = vunpack.c.l.b16 %v274
    %v794 = vunpack.c.l.b16 %v275
    %v795 = vunpack.c.l.b16 %v276
    %v796 = vunpack.c.l.b16 %v277
    %v797 = vunpack.c.l.b16 %v278
    %v798 = vunpack.c.l.b16 %v279
    %v799 = vunpack.c.l.b16 %v280
    %v800 = vunpack.c.l.b16 %v281
    %v801 = vunpack.c.l.b16 %v282
    %v802 = vunpack.c.l.b16 %v283
    %v803 = vunpack.c.l.b16 %v284
    %v804 = vunpack.c.l.b16 %v285
    %v805 = vunpack.c.l.b16 %v286
    %v806 = vunpack.c.l.b16 %v287
    %v807 = vunpack.c.l.b16 %v288
    %v808 = vunpack.c.l.b16 %v289
    %v809 = vunpack.c.l.b16 %v290
    %v810 = vunpack.c.l.b16 %v291
    %v811 = vunpack.c.l.b16 %v292
    %v812 = vunpack.c.l.b16 %v293
    %v813 = vunpack.c.l.b16 %v294
    %v814 = vunpack.c.l.b16 %v295
    %v815 = vunpack.c.l.b16 %v296
    %v816 = vunpack.c.l.b16 %v297
    %v817 = vunpack.c.l.b16 %v298
    %v818 = vunpack.c.l.b16 %v299
    %v819 = vunpack.c.l.b16 %v300
    %v820 = vunpack.c.l.b16 %v301
    %v821 = vunpack.c.l.b16 %v302
    %v822 = vunpack.c.l.b16 %v303
    %v823 = vunpack.c.l.b16 %v304
    %v824 = vunpack.c.l.b16 %v305
    %v825 = vunpack.c.l.b16 %v306
    %v826 = vunpack.c.l.b16 %v307
    %v827 = vunpack.c.l.b16 %v308
    %v828 = vunpack.c.l.b16 %v309
    %v829 = vunpack.c.l.b16 %v310
    %v830 = vunpack.c.l.b16 %v311
    %v831 = vunpack.c.l.b16 %v312
    %v832 = vunpack.c.l.b16 %v313
    %v833 = vunpack.c.l.b16 %v314
    %v834 = vunpack.c.l.b16 %v315
    %v835 = vunpack.c.l.b16 %v316
    %v836 = vunpack.c.l.b16 %v317
    %v837 = vunpack.c.l.b16 %v318
    %v838 = vunpack.c.l.b16 %v319
    %v839 = vunpack.c.l.b16 %v320
    %v840 = vunpack.c.l.b16 %v321
    %v841 = vunpack.c.l.b16 %v322
    %v842 = vunpack.c.l.b16 %v323
    %v843 = vunpack.c.l.b16 %v324
    %v844 = vunpack.c.l.b16 %v325
    %v845 = vunpack.c.l.b16 %v326
    %v846 = vunpack.c.l.b16 %v327
    %v847 = vunpack.c.l.b16 %v328
    %v848 = vunpack.c.l.b16 %v329
    %v849 = vunpack.c.l.b16 %v330
    %v850 = vunpack.c.l.b16 %v331
    %v851 = vunpack.c.l.b16 %v332
    %v852 = vunpack.c.l.b16 %v333
    %v853 = vunpack.c.l.b16 %v334
    %v854 = vunpack.c.l.b16 %v335
    %v855 = vunpack.c.l.b16 %v336
    %v856 = vunpack.c.l.b16 %v337
    %v857 = vunpack.c.l.b16 %v338
    %v858 = vunpack.c.l.b16 %v339
    %v859 = vunpack.c.l.b16 %v340
    %v860 = vunpack.c.l.b16 %v341
    %v861 = vunpack.c.l.b16 %v342
    %v862 = vunpack.c.l.b16 %v343
    %v863 = vunpack.c.l.b16 %v344
    %v864 = vunpack.c.l.b16 %v345
    %v865 = vunpack.c.l.b16 %v346
    %v866 = vunpack.c.l.b16 %v347
    %v867 = vunpack.c.l.b16 %v348
    %v868 = vpack.c.b16 %v613, %v612
    %v869 = vpack.c.b16 %v615, %v614
    %v870 = vpack.c.b16 %v617, %v616
    %v871 = vpack.c.b16 %v619, %v618
    %v872 = vpack.c.b16 %v621, %v620
    %v873 = vpack.c.b16 %v623, %v622
    %v874 = vpack.c.b16 %v625, %v624
    %v875 = vpack.c.b16 %v627, %v626
    %v876 = vpack.c.b16 %v629, %v628
    %v877 = vpack.c.b16 %v631, %v630
    %v878 = vpack.c.b16 %v633, %v632
    %v879 = vpack.c.b16 %v635, %v634
    %v880 = vpack.c.b16 %v637, %v636
    %v881 = vpack.c.b16 %v639, %v638
    %v882 = vpack.c.b16 %v641, %v640
    %v883 = vpack.c.b16 %v643, %v642
    %v884 = vpack.c.b16 %v645, %v644
    %v885 = vpack.c.b16 %v647, %v646
    %v886 = vpack.c.b16 %v649, %v648
    %v887 = vpack.c.b16 %v651, %v650
    %v888 = vpack.c.b16 %v653, %v652
    %v889 = vpack.c.b16 %v655, %v654
    %v890 = vpack.c.b16 %v657, %v656
    %v891 = vpack.c.b16 %v659, %v658
    %v892 = vpack.c.b16 %v661, %v660
    %v893 = vpack.c.b16 %v663, %v662
    %v894 = vpack.c.b16 %v665, %v664
    %v895 = vpack.c.b16 %v667, %v666
    %v896 = vpack.c.b16 %v669, %v668
    %v897 = vpack.c.b16 %v671, %v670
    %v898 = vpack.c.b16 %v673, %v672
    %v899 = vpack.c.b16 %v675, %v674
    %v900 = vpack.c.b16 %v677, %v676
    %v901 = vpack.c.b16 %v679, %v678
    %v902 = vpack.c.b16 %v681, %v680
    %v903 = vpack.c.b16 %v683, %v682
    %v904 = vpack.c.b16 %v685, %v684
    %v905 = vpack.c.b16 %v687, %v686
    %v906 = vpack.c.b16 %v689, %v688
    %v907 = vpack.c.b16 %v691, %v690
    %v908 = vpack.c.b16 %v693, %v692
    %v909 = vpack.c.b16 %v695, %v694
    %v910 = vpack.c.b16 %v697, %v696
    %v911 = vpack.c.b16 %v699, %v698
    %v912 = vpack.c.b16 %v701, %v700
    %v913 = vpack.c.b16 %v703, %v702
    %v914 = vpack.c.b16 %v705, %v704
    %v915 = vpack.c.b16 %v707, %v706
    %v916 = vpack.c.b16 %v709, %v708
    %v917 = vpack.c.b16 %v711, %v710
    %v918 = vpack.c.b16 %v713, %v712
    %v919 = vpack.c.b16 %v715, %v714
    %v920 = vpack.c.b16 %v717, %v716
    %v921 = vpack.c.b16 %v719, %v718
    %v922 = vpack.c.b16 %v721, %v720
    %v923 = vpack.c.b16 %v723, %v722
    %v924 = vpack.c.b16 %v725, %v724
    %v925 = vpack.c.b16 %v727, %v726
    %v926 = vpack.c.b16 %v729, %v728
    %v927 = vpack.c.b16 %v731, %v730
    %v928 = vpack.c.b16 %v733, %v732
    %v929 = vpack.c.b16 %v735, %v734
    %v930 = vpack.c.b16 %v737, %v736
    %v931 = vpack.c.b16 %v739, %v738
    %v932 = vpack.c.b16 %v741, %v740
    %v933 = vpack.c.b16 %v743, %v742
    %v934 = vpack.c.b16 %v745, %v744
    %v935 = vpack.c.b16 %v747, %v746
    %v936 = vpack.c.b16 %v749, %v748
    %v937 = vpack.c.b16 %v751, %v750
    %v938 = vpack.c.b16 %v753, %v752
    %v939 = vpack.c.b16 %v755, %v754
    %v940 = vpack.c.b16 %v757, %v756
    %v941 = vpack.c.b16 %v759, %v758
    %v942 = vpack.c.b16 %v761, %v760
    %v943 = vpack.c.b16 %v763, %v762
    %v944 = vpack.c.b16 %v765, %v764
    %v945 = vpack.c.b16 %v767, %v766
    %v946 = vpack.c.b16 %v769, %v768
    %v947 = vpack.c.b16 %v771, %v770
    %v948 = vpack.c.b16 %v773, %v772
    %v949 = vpack.c.b16 %v775, %v774
    %v950 = vpack.c.b16 %v777, %v776
    %v951 = vpack.c.b16 %v779, %v778
    %v952 = vpack.c.b16 %v781, %v780
    %v953 = vpack.c.b16 %v783, %v782
    %v954 = vpack.c.b16 %v785, %v784
    %v955 = vpack.c.b16 %v787, %v786
    %v956 = vpack.c.b16 %v789, %v788
    %v957 = vpack.c.b16 %v791, %v790
    %v958 = vpack.c.b16 %v793, %v792
    %v959 = vpack.c.b16 %v795, %v794
    %v960 = vpack.c.b16 %v797, %v796
    %v961 = vpack.c.b16 %v799, %v798
    %v962 = vpack.c.b16 %v801, %v800
    %v963 = vpack.c.b16 %v803, %v802
    %v964 = vpack.c.b16 %v805, %v804
    %v965 = vpack.c.b16 %v807, %v806
    %v966 = vpack.c.b16 %v809, %v808
    %v967 = vpack.c.b16 %v811, %v810
    %v968 = vpack.c.b16 %v813, %v812
    %v969 = vpack.c.b16 %v815, %v814
    %v970 = vpack.c.b16 %v817, %v816
    %v971 = vpack.c.b16 %v819, %v818
    %v972 = vpack.c.b16 %v821, %v820
    %v973 = vpack.c.b16 %v823, %v822
    %v974 = vpack.c.b16 %v825, %v824
    %v975 = vpack.c.b16 %v827, %v826
    %v976 = vpack.c.b16 %v829, %v828
    %v977 = vpack.c.b16 %v831, %v830
    %v978 = vpack.c.b16 %v833, %v832
    %v979 = vpack.c.b16 %v835, %v834
    %v980 = vpack.c.b16 %v837, %v836
    %v981 = vpack.c.b16 %v839, %v838
    %v982 = vpack.c.b16 %v841, %v840
    %v983 = vpack.c.b16 %v843, %v842
    %v984 = vpack.c.b16 %v845, %v844
    %v985 = vpack.c.b16 %v847, %v846
    %v986 = vpack.c.b16 %v849, %v848
    %v987 = vpack.c.b16 %v851, %v850
    %v988 = vpack.c.b16 %v853, %v852
    %v989 = vpack.c.b16 %v855, %v854
    %v990 = vpack.c.b16 %v857, %v856
    %v991 = vpack.c.b16 %v859, %v858
    %v992 = vpack.c.b16 %v861, %v860
    %v993 = vpack.c.b16 %v863, %v862
    %v994 = vpack.c.b16 %v865, %v864
    %v995 = vpack.c.b16 %v867, %v866
    %1124 = vmatprep.subr.bf16.mxu0 0
    %1125 = vmatpush1.bf16.msra.mxu0 %v868
    %1126 = vmatprep.subr.bf16.mxu0 0
    %1127 = vmatpush1.bf16.msra.mxu0 %v869
    %1128 = vmatprep.subr.bf16.mxu0 0
    %1129 = vmatpush1.bf16.msra.mxu0 %v870
    %1130 = vmatprep.subr.bf16.mxu0 0
    %1131 = vmatpush1.bf16.msra.mxu0 %v871
    %1132 = vmatprep.subr.bf16.mxu0 0
    %1133 = vmatpush1.bf16.msra.mxu0 %v872
    %1134 = vmatprep.subr.bf16.mxu0 0
    %1135 = vmatpush1.bf16.msra.mxu0 %v873
    %1136 = vmatprep.subr.bf16.mxu0 0
    %1137 = vmatpush1.bf16.msra.mxu0 %v874
    %1138 = vmatprep.subr.bf16.mxu0 0
    %1139 = vmatpush1.bf16.msra.mxu0 %v875
    %1140 = vmatprep.subr.bf16.mxu0 0
    %1141 = vmatpush1.bf16.msra.mxu0 %v876
    %1142 = vmatprep.subr.bf16.mxu0 0
    %1143 = vmatpush1.bf16.msra.mxu0 %v877
    %1144 = vmatprep.subr.bf16.mxu0 0
    %1145 = vmatpush1.bf16.msra.mxu0 %v878
    %1146 = vmatprep.subr.bf16.mxu0 0
    %1147 = vmatpush1.bf16.msra.mxu0 %v879
    %1148 = vmatprep.subr.bf16.mxu0 0
    %1149 = vmatpush1.bf16.msra.mxu0 %v880
    %1150 = vmatprep.subr.bf16.mxu0 0
    %1151 = vmatpush1.bf16.msra.mxu0 %v881
    %1152 = vmatprep.subr.bf16.mxu0 0
    %1153 = vmatpush1.bf16.msra.mxu0 %v882
    %1154 = vmatprep.subr.bf16.mxu0 0
    %1155 = vmatpush1.bf16.msra.mxu0 %v883
    %1156 = vmatprep.mubr.bf16.mxu0 %v78
    %1157 = vmatmul.mubr.bf16.gmra.mrb[0].mxu0 %v77
    %v1158 = vpop.f32.mrb[0].mxu0
    %v1159 = vadd.f32 %v354, %v1158
    %v1160 = vpop.f32.mrb[0].mxu0
    %v1161 = vpop.f32.mrb[0].mxu0
    %v1162 = vpop.f32.mrb[0].mxu0
    %1163 = vdwg.mxu0
    %1164 = vmatprep.subr.bf16.mxu0 0
    %1165 = vmatpush1.bf16.msra.mxu0 %v884
    %1166 = vmatprep.subr.bf16.mxu0 0
    %1167 = vmatpush1.bf16.msra.mxu0 %v885
    %1168 = vmatprep.subr.bf16.mxu0 0
    %1169 = vmatpush1.bf16.msra.mxu0 %v886
    %1170 = vmatprep.subr.bf16.mxu0 0
    %1171 = vmatpush1.bf16.msra.mxu0 %v887
    %1172 = vmatprep.subr.bf16.mxu0 0
    %1173 = vmatpush1.bf16.msra.mxu0 %v888
    %1174 = vmatprep.subr.bf16.mxu0 0
    %1175 = vmatpush1.bf16.msra.mxu0 %v889
    %1176 = vmatprep.subr.bf16.mxu0 0
    %1177 = vmatpush1.bf16.msra.mxu0 %v890
    %1178 = vmatprep.subr.bf16.mxu0 0
    %1179 = vmatpush1.bf16.msra.mxu0 %v891
    %1180 = vmatprep.subr.bf16.mxu0 0
    %1181 = vmatpush1.bf16.msra.mxu0 %v892
    %1182 = vmatprep.subr.bf16.mxu0 0
    %1183 = vmatpush1.bf16.msra.mxu0 %v893
    %1184 = vmatprep.subr.bf16.mxu0 0
    %1185 = vmatpush1.bf16.msra.mxu0 %v894
    %1186 = vmatprep.subr.bf16.mxu0 0
    %1187 = vmatpush1.bf16.msra.mxu0 %v895
    %1188 = vmatprep.subr.bf16.mxu0 0
    %1189 = vmatpush1.bf16.msra.mxu0 %v896
    %1190 = vmatprep.subr.bf16.mxu0 0
    %1191 = vmatpush1.bf16.msra.mxu0 %v897
    %1192 = vmatprep.subr.bf16.mxu0 0
    %1193 = vmatpush1.bf16.msra.mxu0 %v898
    %1194 = vmatprep.subr.bf16.mxu0 0
    %1195 = vmatpush1.bf16.msra.mxu0 %v899
    %1196 = vmatprep.mubr.bf16.mxu0 %v80
    %1197 = vmatmul.mubr.bf16.gmra.mrb[0].mxu0 %v79
    %v1198 = vpop.f32.mrb[0].mxu0
    %v1199 = vadd.f32 %v1159, %v1198
    %v1200 = vpop.f32.mrb[0].mxu0
    %v1201 = vpop.f32.mrb[0].mxu0
    %v1202 = vpop.f32.mrb[0].mxu0
    %1203 = vdwg.mxu0
    %1204 = vmatprep.subr.bf16.mxu0 0
    %1205 = vmatpush1.bf16.msra.mxu0 %v900
    %1206 = vmatprep.subr.bf16.mxu0 0
    %1207 = vmatpush1.bf16.msra.mxu0 %v901
    %1208 = vmatprep.subr.bf16.mxu0 0
    %1209 = vmatpush1.bf16.msra.mxu0 %v902
    %1210 = vmatprep.subr.bf16.mxu0 0
    %1211 = vmatpush1.bf16.msra.mxu0 %v903
    %1212 = vmatprep.subr.bf16.mxu0 0
    %1213 = vmatpush1.bf16.msra.mxu0 %v904
    %1214 = vmatprep.subr.bf16.mxu0 0
    %1215 = vmatpush1.bf16.msra.mxu0 %v905
    %1216 = vmatprep.subr.bf16.mxu0 0
    %1217 = vmatpush1.bf16.msra.mxu0 %v906
    %1218 = vmatprep.subr.bf16.mxu0 0
    %1219 = vmatpush1.bf16.msra.mxu0 %v907
    %1220 = vmatprep.subr.bf16.mxu0 0
    %1221 = vmatpush1.bf16.msra.mxu0 %v908
    %1222 = vmatprep.subr.bf16.mxu0 0
    %1223 = vmatpush1.bf16.msra.mxu0 %v909
    %1224 = vmatprep.subr.bf16.mxu0 0
    %1225 = vmatpush1.bf16.msra.mxu0 %v910
    %1226 = vmatprep.subr.bf16.mxu0 0
    %1227 = vmatpush1.bf16.msra.mxu0 %v911
    %1228 = vmatprep.subr.bf16.mxu0 0
    %1229 = vmatpush1.bf16.msra.mxu0 %v912
    %1230 = vmatprep.subr.bf16.mxu0 0
    %1231 = vmatpush1.bf16.msra.mxu0 %v913
    %1232 = vmatprep.subr.bf16.mxu0 0
    %1233 = vmatpush1.bf16.msra.mxu0 %v914
    %1234 = vmatprep.subr.bf16.mxu0 0
    %1235 = vmatpush1.bf16.msra.mxu0 %v915
    %1236 = vmatprep.mubr.bf16.mxu0 %v82
    %1237 = vmatmul.mubr.bf16.gmra.mrb[0].mxu0 %v81
    %v1238 = vpop.f32.mrb[0].mxu0
    %v1239 = vadd.f32 %v1199, %v1238
    %v1240 = vpop.f32.mrb[0].mxu0
    %v1241 = vpop.f32.mrb[0].mxu0
    %v1242 = vpop.f32.mrb[0].mxu0
    %1243 = vdwg.mxu0
    %1244 = vmatprep.subr.bf16.mxu0 0
    %1245 = vmatpush1.bf16.msra.mxu0 %v916
    %1246 = vmatprep.subr.bf16.mxu0 0
    %1247 = vmatpush1.bf16.msra.mxu0 %v917
    %1248 = vmatprep.subr.bf16.mxu0 0
    %1249 = vmatpush1.bf16.msra.mxu0 %v918
    %1250 = vmatprep.subr.bf16.mxu0 0
    %1251 = vmatpush1.bf16.msra.mxu0 %v919
    %1252 = vmatprep.subr.bf16.mxu0 0
    %1253 = vmatpush1.bf16.msra.mxu0 %v920
    %1254 = vmatprep.subr.bf16.mxu0 0
    %1255 = vmatpush1.bf16.msra.mxu0 %v921
    %1256 = vmatprep.subr.bf16.mxu0 0
    %1257 = vmatpush1.bf16.msra.mxu0 %v922
    %1258 = vmatprep.subr.bf16.mxu0 0
    %1259 = vmatpush1.bf16.msra.mxu0 %v923
    %1260 = vmatprep.subr.bf16.mxu0 0
    %1261 = vmatpush1.bf16.msra.mxu0 %v924
    %1262 = vmatprep.subr.bf16.mxu0 0
    %1263 = vmatpush1.bf16.msra.mxu0 %v925
    %1264 = vmatprep.subr.bf16.mxu0 0
    %1265 = vmatpush1.bf16.msra.mxu0 %v926
    %1266 = vmatprep.subr.bf16.mxu0 0
    %1267 = vmatpush1.bf16.msra.mxu0 %v927
    %1268 = vmatprep.subr.bf16.mxu0 0
    %1269 = vmatpush1.bf16.msra.mxu0 %v928
    %1270 = vmatprep.subr.bf16.mxu0 0
    %1271 = vmatpush1.bf16.msra.mxu0 %v929
    %1272 = vmatprep.subr.bf16.mxu0 0
    %1273 = vmatpush1.bf16.msra.mxu0 %v930
    %1274 = vmatprep.subr.bf16.mxu0 0
    %1275 = vmatpush1.bf16.msra.mxu0 %v931
    %1276 = vmatprep.mubr.bf16.mxu0 %v84
    %1277 = vmatmul.mubr.bf16.gmra.mrb[0].mxu0 %v83
    %v1278 = vpop.f32.mrb[0].mxu0
    %v1279 = vadd.f32 %v1239, %v1278
    %v1280 = vpop.f32.mrb[0].mxu0
    %v1281 = vpop.f32.mrb[0].mxu0
    %v1282 = vpop.f32.mrb[0].mxu0
    %1283 = vdwg.mxu0
    %1284 = vmatprep.subr.bf16.mxu0 0
    %1285 = vmatpush1.bf16.msra.mxu0 %v932
    %1286 = vmatprep.subr.bf16.mxu0 0
    %1287 = vmatpush1.bf16.msra.mxu0 %v933
    %1288 = vmatprep.subr.bf16.mxu0 0
    %1289 = vmatpush1.bf16.msra.mxu0 %v934
    %1290 = vmatprep.subr.bf16.mxu0 0
    %1291 = vmatpush1.bf16.msra.mxu0 %v935
    %1292 = vmatprep.subr.bf16.mxu0 0
    %1293 = vmatpush1.bf16.msra.mxu0 %v936
    %1294 = vmatprep.subr.bf16.mxu0 0
    %1295 = vmatpush1.bf16.msra.mxu0 %v937
    %1296 = vmatprep.subr.bf16.mxu0 0
    %1297 = vmatpush1.bf16.msra.mxu0 %v938
    %1298 = vmatprep.subr.bf16.mxu0 0
    %1299 = vmatpush1.bf16.msra.mxu0 %v939
    %1300 = vmatprep.subr.bf16.mxu0 0
    %1301 = vmatpush1.bf16.msra.mxu0 %v940
    %1302 = vmatprep.subr.bf16.mxu0 0
    %1303 = vmatpush1.bf16.msra.mxu0 %v941
    %1304 = vmatprep.subr.bf16.mxu0 0
    %1305 = vmatpush1.bf16.msra.mxu0 %v942
    %1306 = vmatprep.subr.bf16.mxu0 0
    %1307 = vmatpush1.bf16.msra.mxu0 %v943
    %1308 = vmatprep.subr.bf16.mxu0 0
    %1309 = vmatpush1.bf16.msra.mxu0 %v944
    %1310 = vmatprep.subr.bf16.mxu0 0
    %1311 = vmatpush1.bf16.msra.mxu0 %v945
    %1312 = vmatprep.subr.bf16.mxu0 0
    %1313 = vmatpush1.bf16.msra.mxu0 %v946
    %1314 = vmatprep.subr.bf16.mxu0 0
    %1315 = vmatpush1.bf16.msra.mxu0 %v947
    %1316 = vmatprep.mubr.bf16.mxu0 %v86
    %1317 = vmatmul.mubr.bf16.gmra.mrb[0].mxu0 %v85
    %v1318 = vpop.f32.mrb[0].mxu0
    %v1319 = vadd.f32 %v1279, %v1318
    %v1320 = vpop.f32.mrb[0].mxu0
    %v1321 = vpop.f32.mrb[0].mxu0
    %v1322 = vpop.f32.mrb[0].mxu0
    %1323 = vdwg.mxu0
    %1324 = vmatprep.subr.bf16.mxu0 0
    %1325 = vmatpush1.bf16.msra.mxu0 %v948
    %1326 = vmatprep.subr.bf16.mxu0 0
    %1327 = vmatpush1.bf16.msra.mxu0 %v949
    %1328 = vmatprep.subr.bf16.mxu0 0
    %1329 = vmatpush1.bf16.msra.mxu0 %v950
    %1330 = vmatprep.subr.bf16.mxu0 0
    %1331 = vmatpush1.bf16.msra.mxu0 %v951
    %1332 = vmatprep.subr.bf16.mxu0 0
    %1333 = vmatpush1.bf16.msra.mxu0 %v952
    %1334 = vmatprep.subr.bf16.mxu0 0
    %1335 = vmatpush1.bf16.msra.mxu0 %v953
    %1336 = vmatprep.subr.bf16.mxu0 0
    %1337 = vmatpush1.bf16.msra.mxu0 %v954
    %1338 = vmatprep.subr.bf16.mxu0 0
    %1339 = vmatpush1.bf16.msra.mxu0 %v955
    %1340 = vmatprep.subr.bf16.mxu0 0
    %1341 = vmatpush1.bf16.msra.mxu0 %v956
    %1342 = vmatprep.subr.bf16.mxu0 0
    %1343 = vmatpush1.bf16.msra.mxu0 %v957
    %1344 = vmatprep.subr.bf16.mxu0 0
    %1345 = vmatpush1.bf16.msra.mxu0 %v958
    %1346 = vmatprep.subr.bf16.mxu0 0
    %1347 = vmatpush1.bf16.msra.mxu0 %v959
    %1348 = vmatprep.subr.bf16.mxu0 0
    %1349 = vmatpush1.bf16.msra.mxu0 %v960
    %1350 = vmatprep.subr.bf16.mxu0 0
    %1351 = vmatpush1.bf16.msra.mxu0 %v961
    %1352 = vmatprep.subr.bf16.mxu0 0
    %1353 = vmatpush1.bf16.msra.mxu0 %v962
    %1354 = vmatprep.subr.bf16.mxu0 0
    %1355 = vmatpush1.bf16.msra.mxu0 %v963
    %1356 = vmatprep.mubr.bf16.mxu0 %v88
    %1357 = vmatmul.mubr.bf16.gmra.mrb[0].mxu0 %v87
    %v1358 = vpop.f32.mrb[0].mxu0
    %v1359 = vadd.f32 %v1319, %v1358
    %v1360 = vpop.f32.mrb[0].mxu0
    %v1361 = vpop.f32.mrb[0].mxu0
    %v1362 = vpop.f32.mrb[0].mxu0
    %1363 = vdwg.mxu0
    %1364 = vmatprep.subr.bf16.mxu0 0
    %1365 = vmatpush1.bf16.msra.mxu0 %v964
    %1366 = vmatprep.subr.bf16.mxu0 0
    %1367 = vmatpush1.bf16.msra.mxu0 %v965
    %1368 = vmatprep.subr.bf16.mxu0 0
    %1369 = vmatpush1.bf16.msra.mxu0 %v966
    %1370 = vmatprep.subr.bf16.mxu0 0
    %1371 = vmatpush1.bf16.msra.mxu0 %v967
    %1372 = vmatprep.subr.bf16.mxu0 0
    %1373 = vmatpush1.bf16.msra.mxu0 %v968
    %1374 = vmatprep.subr.bf16.mxu0 0
    %1375 = vmatpush1.bf16.msra.mxu0 %v969
    %1376 = vmatprep.subr.bf16.mxu0 0
    %1377 = vmatpush1.bf16.msra.mxu0 %v970
    %1378 = vmatprep.subr.bf16.mxu0 0
    %1379 = vmatpush1.bf16.msra.mxu0 %v971
    %1380 = vmatprep.subr.bf16.mxu0 0
    %1381 = vmatpush1.bf16.msra.mxu0 %v972
    %1382 = vmatprep.subr.bf16.mxu0 0
    %1383 = vmatpush1.bf16.msra.mxu0 %v973
    %1384 = vmatprep.subr.bf16.mxu0 0
    %1385 = vmatpush1.bf16.msra.mxu0 %v974
    %1386 = vmatprep.subr.bf16.mxu0 0
    %1387 = vmatpush1.bf16.msra.mxu0 %v975
    %1388 = vmatprep.subr.bf16.mxu0 0
    %1389 = vmatpush1.bf16.msra.mxu0 %v976
    %1390 = vmatprep.subr.bf16.mxu0 0
    %1391 = vmatpush1.bf16.msra.mxu0 %v977
    %1392 = vmatprep.subr.bf16.mxu0 0
    %1393 = vmatpush1.bf16.msra.mxu0 %v978
    %1394 = vmatprep.subr.bf16.mxu0 0
    %1395 = vmatpush1.bf16.msra.mxu0 %v979
    %1396 = vmatprep.mubr.bf16.mxu0 %v90
    %1397 = vmatmul.mubr.bf16.gmra.mrb[0].mxu0 %v89
    %v1398 = vpop.f32.mrb[0].mxu0
    %v1399 = vadd.f32 %v1359, %v1398
    %v1400 = vpop.f32.mrb[0].mxu0
    %v1401 = vpop.f32.mrb[0].mxu0
    %v1402 = vpop.f32.mrb[0].mxu0
    %1403 = vdwg.mxu0
    %1404 = vmatprep.subr.bf16.mxu0 0
    %1405 = vmatpush1.bf16.msra.mxu0 %v980
    %1406 = vmatprep.subr.bf16.mxu0 0
    %1407 = vmatpush1.bf16.msra.mxu0 %v981
    %1408 = vmatprep.subr.bf16.mxu0 0
    %1409 = vmatpush1.bf16.msra.mxu0 %v982
    %1410 = vmatprep.subr.bf16.mxu0 0
    %1411 = vmatpush1.bf16.msra.mxu0 %v983
    %1412 = vmatprep.subr.bf16.mxu0 0
    %1413 = vmatpush1.bf16.msra.mxu0 %v984
    %1414 = vmatprep.subr.bf16.mxu0 0
    %1415 = vmatpush1.bf16.msra.mxu0 %v985
    %1416 = vmatprep.subr.bf16.mxu0 0
    %1417 = vmatpush1.bf16.msra.mxu0 %v986
    %1418 = vmatprep.subr.bf16.mxu0 0
    %1419 = vmatpush1.bf16.msra.mxu0 %v987
    %1420 = vmatprep.subr.bf16.mxu0 0
    %1421 = vmatpush1.bf16.msra.mxu0 %v988
    %1422 = vmatprep.subr.bf16.mxu0 0
    %1423 = vmatpush1.bf16.msra.mxu0 %v989
    %1424 = vmatprep.subr.bf16.mxu0 0
    %1425 = vmatpush1.bf16.msra.mxu0 %v990
    %1426 = vmatprep.subr.bf16.mxu0 0
    %1427 = vmatpush1.bf16.msra.mxu0 %v991
    %1428 = vmatprep.subr.bf16.mxu0 0
    %1429 = vmatpush1.bf16.msra.mxu0 %v992
    %1430 = vmatprep.subr.bf16.mxu0 0
    %1431 = vmatpush1.bf16.msra.mxu0 %v993
    %1432 = vmatprep.subr.bf16.mxu0 0
    %1433 = vmatpush1.bf16.msra.mxu0 %v994
    %1434 = vmatprep.subr.bf16.mxu0 0
    %1435 = vmatpush1.bf16.msra.mxu0 %v995
    %1436 = vmatprep.mubr.bf16.mxu0 %v92
    %1437 = vmatmul.mubr.bf16.gmra.mrb[0].mxu0 %v91
    %v1438 = vpop.f32.mrb[0].mxu0
    %v1439 = vadd.f32 %v1399, %v1438
    %v1440 = vpop.f32.mrb[0].mxu0
    %v1441 = vpop.f32.mrb[0].mxu0
    %v1442 = vpop.f32.mrb[0].mxu0
    %1443 = vdwg.mxu0
    %v1444 = vmax.f32 %v1439, 0.0
    %v1445 = vpack.c.bf16 %v1444, %v1444
    %v1446 = vld [vmem:[#allocation7] sm:$0xf]
    %v1447 = vld [vmem:[#allocation7 + $0x4] sm:$0xf]
    %v1448 = vld [vmem:[#allocation7 + $0x8] sm:$0xf]
    %v1449 = vld [vmem:[#allocation7 + $0xc] sm:$0xf]
    %v1450 = vld [vmem:[#allocation7 + $0x10] sm:$0xf]
    %v1451 = vld [vmem:[#allocation7 + $0x14] sm:$0xf]
    %v1452 = vld [vmem:[#allocation7 + $0x18] sm:$0xf]
    %v1453 = vld [vmem:[#allocation7 + $0x1c] sm:$0xf]
    %v1454 = vld [vmem:[#allocation7 + $0x20] sm:$0xf]
    %v1455 = vld [vmem:[#allocation7 + $0x24] sm:$0xf]
    %v1456 = vld [vmem:[#allocation7 + $0x28] sm:$0xf]
    %v1457 = vld [vmem:[#allocation7 + $0x2c] sm:$0xf]
    %v1458 = vld [vmem:[#allocation7 + $0x30] sm:$0xf]
    %v1459 = vld [vmem:[#allocation7 + $0x34] sm:$0xf]
    %v1460 = vld [vmem:[#allocation7 + $0x38] sm:$0xf]
    %v1461 = vld [vmem:[#allocation7 + $0x3c] sm:$0xf]
    %v1462 = vld [vmem:[%s4] sm:$0x1]
    %v1464 = vlaneseq
    %v1465 = vshrl.u32 %v1464, 7
    %v1466 = vsub.s32 0, %v1465
    %v1467 = vrot.slane %v1462, %v1466
    %v1485 = vunpack.c.l.b16 %v1446
    %v1486 = vunpack.c.l.b16 %v1447
    %v1487 = vunpack.c.l.b16 %v1448
    %v1488 = vunpack.c.l.b16 %v1449
    %v1489 = vunpack.c.l.b16 %v1450
    %v1490 = vunpack.c.l.b16 %v1451
    %v1491 = vunpack.c.l.b16 %v1452
    %v1492 = vunpack.c.l.b16 %v1453
    %v1493 = vunpack.c.l.b16 %v1454
    %v1494 = vunpack.c.l.b16 %v1455
    %v1495 = vunpack.c.l.b16 %v1456
    %v1496 = vunpack.c.l.b16 %v1457
    %v1497 = vunpack.c.l.b16 %v1458
    %v1498 = vunpack.c.l.b16 %v1459
    %v1499 = vunpack.c.l.b16 %v1460
    %v1500 = vunpack.c.l.b16 %v1461
    %v1501 = vpack.c.b16 %v1486, %v1485
    %v1502 = vpack.c.b16 %v1488, %v1487
    %v1503 = vpack.c.b16 %v1490, %v1489
    %v1504 = vpack.c.b16 %v1492, %v1491
    %v1505 = vpack.c.b16 %v1494, %v1493
    %v1506 = vpack.c.b16 %v1496, %v1495
    %v1507 = vpack.c.b16 %v1498, %v1497
    %v1508 = vpack.c.b16 %v1500, %v1499
    %1517 = vmatprep.subr.bf16.mxu0 0
    %1518 = vmatpush1.bf16.msra.mxu0 %v1501
    %1519 = vmatprep.subr.bf16.mxu0 0
    %1520 = vmatpush1.bf16.msra.mxu0 %v1502
    %1521 = vmatprep.subr.bf16.mxu0 0
    %1522 = vmatpush1.bf16.msra.mxu0 %v1503
    %1523 = vmatprep.subr.bf16.mxu0 0
    %1524 = vmatpush1.bf16.msra.mxu0 %v1504
    %1525 = vmatprep.subr.bf16.mxu0 0
    %1526 = vmatpush1.bf16.msra.mxu0 %v1505
    %1527 = vmatprep.subr.bf16.mxu0 0
    %1528 = vmatpush1.bf16.msra.mxu0 %v1506
    %1529 = vmatprep.subr.bf16.mxu0 0
    %1530 = vmatpush1.bf16.msra.mxu0 %v1507
    %1531 = vmatprep.subr.bf16.mxu0 0
    %1532 = vmatpush1.bf16.msra.mxu0 %v1508
    %1533 = vmatprep.subr.bf16.mxu0 0
    %1534 = vmatpush1.bf16.msra.mxu0 0
    %1535 = vmatprep.subr.bf16.mxu0 0
    %1536 = vmatpush1.bf16.msra.mxu0 0
    %1537 = vmatprep.subr.bf16.mxu0 0
    %1538 = vmatpush1.bf16.msra.mxu0 0
    %1539 = vmatprep.subr.bf16.mxu0 0
    %1540 = vmatpush1.bf16.msra.mxu0 0
    %1541 = vmatprep.subr.bf16.mxu0 0
    %1542 = vmatpush1.bf16.msra.mxu0 0
    %1543 = vmatprep.subr.bf16.mxu0 0
    %1544 = vmatpush1.bf16.msra.mxu0 0
    %1545 = vmatprep.subr.bf16.mxu0 0
    %1546 = vmatpush1.bf16.msra.mxu0 0
    %1547 = vmatprep.subr.bf16.mxu0 0
    %1548 = vmatpush1.bf16.msra.mxu0 0
    %1549 = vmatprep.mubr.bf16.mxu0 0
    %1550 = vmatmul.mubr.bf16.gmra.mrb[0].mxu0 %v1445
    %v1551 = vpop.f32.mrb[0].mxu0
    %v1552 = vadd.f32 %v1467, %v1551
    %v1553 = vpop.f32.mrb[0].mxu0
    %v1554 = vpop.f32.mrb[0].mxu0
    %v1555 = vpop.f32.mrb[0].mxu0
    %1556 = vdwg.mxu0
    %v1557 = vlaneseq
    %v1558 = vand.u32 %v1557, 127
    %vm1559 = vcmp.lt.s32.totalorder %v1558, 10
    %v1560 = vsel %vm1559, %v1552, -1e+30
    %1561 = vmax.xlane.f32.xlu0 %v1560
    %v1562 = vpop.xlane.xlu0 %1561
    %v1563 = vsub.f32 %v1560, %v1562
    %v1564 = vmul.f32 %v1563, 1.442695
    %v1565 = vpow.pop %v1564
    %1566 = vadd.xlane.f32.xlu0 %v1565
    %v1567 = vpop.xlane.xlu0 %1566
    %v1568 = vrcp.pop %v1567
    %v1569 = vmul.f32 %v1565, %v1568
    %1570 = vst [vmem:[#allocation8] sm:$0xff] %v1569
    // Predicated region
    $region34: #{tpu_custom_call.1} parent=1 // pred_check
      _
    $region35: #{tpu_custom_call.1} parent=1 // pred_check_branch
      %1572 = sbr.rel (0) target = $region37
    $region36: #{tpu_custom_call.1} parent=1 // pred_region
      %s1574 = ssub.s32 128, 128
      %1575 = vsyncadd [#allocation4], %s1574
      %s1577 = sshll.u32 [#allocation8], 4
      %s1578 = int_to_ptr.vmem [resolvable:$true] %s1577
      %1580 = dma.vmem_to_hbm [thread:$0]  %s1578, 128, %s5, [#allocation4]
    $region37: #{tpu_custom_call.1} parent=1 // pred_fallthru
      _
    // Predicated region
    $region38: #{tpu_custom_call.1} parent=1 // pred_check
      _
    $region39: #{tpu_custom_call.1} parent=1 // pred_check_branch
      %1582 = sbr.rel (0) target = $region41
    $region40: #{tpu_custom_call.1} parent=1 // pred_region
      %1583 = dma.done [#allocation4], 128
    $region41: #{tpu_custom_call.1} parent=1 // pred_fallthru
      _
    %1584 = vsyncpa [#allocation3], 1
    %1585 = vsyncpa [#allocation6], 1
    %1586 = vsyncpa [#allocation4], 1

</llo_original>
